<compile_context>
chip_gen: v7x
topology: tpu7x:2x2x1
jax: 0.10.0
libtpu: 0.0.40
codegen_flags: <defaults>
</compile_context>

<pallas_src>
import functools

import jax
import jax.numpy as jnp
from jax.experimental import pallas as pl
from jax.experimental.pallas import tpu as pltpu

_LANE = 128
_SUBLANE = 8
_BF16_SUBLANE = 16  # bf16 packs 16 sublanes per vreg; keep tiles a multiple of 16


def _round_up(x, m):
    return ((x + m - 1) // m) * m


def _tpu_vmem_capacity_bytes():
    """Trace-time VMEM capacity query with a conservative (v7x-like) fallback."""
    try:
        return int(pltpu.get_tpu_info().vmem_capacity_bytes)
    except Exception:
        return 64 << 20


def _make_mlp_kernel(num_hidden_layers: int, compute_dtype):
    """Kernel: Linear->ReLU, num_hidden_layers x (Linear->ReLU), Linear.

    Ref order: x, (w, b) hidden1, (w, b) * num_hidden_layers, (w, b) predict, out.
    Weights are (in_pad, out_pad) in compute_dtype; biases are (1, out_pad) f32.
    """

    def kernel(*refs):
        x_ref = refs[0]
        o_ref = refs[-1]
        wb = refs[1:-1]

        def layer(h_f32, w_ref, b_ref, relu):
            # MXU matmul: operands cast to compute_dtype, f32 accumulation.
            acc = jnp.dot(
                h_f32.astype(compute_dtype),
                w_ref[...],
                preferred_element_type=jnp.float32,
            )
            # Bias add + ReLU epilogue in f32 on the VPU (v5e has no bf16 VALU).
            acc = acc + b_ref[...]
            if relu:
                acc = jnp.maximum(acc, 0.0)
            return acc

        h = x_ref[...].astype(jnp.float32)

        # hidden1 + ReLU
        h = layer(h, wb[0], wb[1], True)

        # hidden2 ModuleList: Linear + ReLU, repeated (unrolled Python loop)
        for i in range(num_hidden_layers):
            h = layer(h, wb[2 + 2 * i], wb[3 + 2 * i], True)

        # predict (no activation), lane-dense store
        o_ref[...] = layer(h, wb[-2], wb[-1], False).astype(o_ref.dtype)

    return kernel


def prepare_panet_params(params, compute_dtype=jnp.bfloat16):
    """One-time weight prep, hoisted OUT of the per-call forward path.

    params: dict with 'hidden1', 'hidden2' (list), 'predict'; each entry is
    (weight(out, in), bias(out,)) matching the PyTorch module's parameters.

    Returns (flat, n_output): flat is a tuple of padded (in_pad, out_pad)
    compute_dtype weights interleaved with (1, out_pad) f32 biases.
    """
    n_feature = params["hidden1"][0].shape[1]
    n_hidden = params["hidden1"][0].shape[0]
    n_output = params["predict"][0].shape[0]
    h_pad = _round_up(n_hidden, _LANE)
    o_pad = _round_up(n_output, _LANE)

    def prep(wb, in_pad, out_pad):
        w, b = wb  # (out, in), (out,)
        out_dim, in_dim = w.shape
        wt = jnp.zeros((in_pad, out_pad), compute_dtype)
        wt = wt.at[:in_dim, :out_dim].set(jnp.asarray(w).T.astype(compute_dtype))
        bp = jnp.zeros((1, out_pad), jnp.float32)
        bp = bp.at[0, :out_dim].set(jnp.asarray(b).astype(jnp.float32))
        return wt, bp

    flat = []
    flat.extend(prep(params["hidden1"], n_feature, h_pad))
    for wb in params["hidden2"]:
        flat.extend(prep(wb, h_pad, h_pad))
    flat.extend(prep(params["predict"], h_pad, o_pad))
    return tuple(flat), int(n_output)


@functools.partial(
    jax.jit, static_argnames=("n_output", "tile_b", "single_buffer_weights")
)
def _panet_forward_impl(x, flat_params, *, n_output, tile_b=None,
                        single_buffer_weights=True):
    flat = tuple(flat_params)
    batch, n_feature = x.shape
    num_hidden = len(flat) // 2 - 2          # length of the hidden2 ModuleList
    compute_dtype = flat[0].dtype            # weight dtype drives the MXU dtype
    h_pad = flat[0].shape[1]
    o_pad = flat[-1].shape[1]
    max_width = max(n_feature, h_pad, o_pad)

    # ---- VMEM budget, per generation -------------------------------------
    weight_bytes = sum(int(a.size) * a.dtype.itemsize for a in flat)
    wbuf = 1 if single_buffer_weights else 2
    fixed_bytes = wbuf * weight_bytes + (1 << 20)

    vmem_cap = _tpu_vmem_capacity_bytes()
    if vmem_cap > (96 << 20):
        # v5e / v6e: 128 MiB VMEM, single TensorCore -> use most of it,
        # a single large tile (fewer grid steps) is fine.
        hard_cap = vmem_cap - (8 << 20)
        want_two_steps = False
    else:
        # v7x-like: 64 MiB per TC, 2 TCs -> leave compiler headroom and keep
        # at least 2 grid steps so the "parallel" axis uses both cores.
        hard_cap = 56 << 20
        want_two_steps = True

    # Per-row VMEM cost: double-buffered x/out tiles + f32 activation
    # intermediates (generous estimate).
    per_row = (2 * n_feature * x.dtype.itemsize
               + 2 * o_pad * x.dtype.itemsize
               + 4 * max_width * 4)

    # ---- Batch tile selection ---------------------------------------------
    batch16 = _round_up(batch, _BF16_SUBLANE)
    rows_fit = (hard_cap - fixed_bytes - (2 << 20)) // per_row
    rows_fit = max(_BF16_SUBLANE, min(1024, (rows_fit // _BF16_SUBLANE) * _BF16_SUBLANE))

    cap = min(rows_fit, batch16)
    if want_two_steps and batch16 >= 2 * _BF16_SUBLANE:
        cap = min(cap, _round_up(pl.cdiv(batch, 2), _BF16_SUBLANE))
    if tile_b is not None:
        cap = min(cap, max(_BF16_SUBLANE, _round_up(int(tile_b), _BF16_SUBLANE)))

    n_blocks = pl.cdiv(batch16, cap)
    tile = _round_up(pl.cdiv(batch16, n_blocks), _BF16_SUBLANE)  # balanced, min pad
    batch_pad = n_blocks * tile

    needed = fixed_bytes + tile * per_row + (2 << 20)
    vmem_limit = int(min(hard_cap, max(32 << 20, needed)))

    # Zero-pad batch rows so the last tile is full (padded rows sliced off below).
    x_p = x
    if batch_pad != batch:
        x_p = jnp.zeros((batch_pad, n_feature), x.dtype).at[:batch, :].set(x)

    # Block specs: x/out tiles move along the batch grid axis; weights & biases
    # use a constant index_map (resident in VMEM) and, when supported, a single
    # pipeline buffer (the second buffer would be pure waste).
    x_spec = pl.BlockSpec((tile, n_feature), lambda i: (i, 0))
    if single_buffer_weights:
        wb_specs = [
            pl.BlockSpec(a.shape, lambda i: (0, 0), pipeline_mode=pl.Buffered(1))
            for a in flat
        ]
    else:
        wb_specs = [pl.BlockSpec(a.shape, lambda i: (0, 0)) for a in flat]
    out_spec = pl.BlockSpec((tile, o_pad), lambda i: (i, 0))

    out_p = pl.pallas_call(
        _make_mlp_kernel(num_hidden, compute_dtype),
        out_shape=jax.ShapeDtypeStruct((batch_pad, o_pad), x.dtype),
        grid=(n_blocks,),
        in_specs=[x_spec] + wb_specs,
        out_specs=out_spec,
        compiler_params=pltpu.CompilerParams(
            dimension_semantics=("parallel",),
            vmem_limit_bytes=vmem_limit,
        ),
    )(x_p, *flat)

    return out_p[:batch, :n_output]


def panet_forward(x, flat_params, n_output, *, tile_b=None):
    """Forward pass. flat_params comes from prepare_panet_params (called once)."""
    try:
        return _panet_forward_impl(
            x, flat_params, n_output=n_output, tile_b=tile_b,
            single_buffer_weights=True)
    except Exception:
        # Fallback for toolchains where pipeline_mode=pl.Buffered(1) is not
        # accepted on pallas_call BlockSpecs: use default double buffering.
        return _panet_forward_impl(
            x, flat_params, n_output=n_output, tile_b=tile_b,
            single_buffer_weights=False)


def init_panet_params(key, n_feature, n_hidden, n_output, hidden_num=1):
    """Deterministic synthetic init mirroring nn.Linear shapes: W (out,in), b (out,)."""

    def linear(key, fan_in, fan_out):
        kw, kb = jax.random.split(key)
        bound = 1.0 / jnp.sqrt(jnp.float32(fan_in))
        w = jax.random.uniform(kw, (fan_out, fan_in), jnp.float32, -bound, bound)
        b = jax.random.uniform(kb, (fan_out,), jnp.float32, -bound, bound)
        return w, b

    keys = jax.random.split(key, 2 + hidden_num)
    return {
        "hidden1": linear(keys[0], n_feature, n_hidden),
        "hidden2": [linear(keys[1 + i], n_hidden, n_hidden) for i in range(hidden_num)],
        "predict": linear(keys[1 + hidden_num], n_hidden, n_output),
    }


def panet_reference(x, params):
    """Plain-JAX f32 reference matching the PyTorch forward."""
    w, b = params["hidden1"]
    h = jax.nn.relu(x @ w.T + b)
    for w, b in params["hidden2"]:
        h = jax.nn.relu(h @ w.T + b)
    w, b = params["predict"]
    return h @ w.T + b


if __name__ == "__main__":
    key = jax.random.PRNGKey(0)
    k_x, k_p, k_x2, k_p2 = jax.random.split(key, 4)

    # --- Small config matching the original module defaults (single grid step).
    n_feature, n_hidden, n_output, hidden_num = 16, 32, 4, 1
    batch = 8
    x = jax.random.normal(k_x, (batch, n_feature), jnp.float32)
    params = init_panet_params(k_p, n_feature, n_hidden, n_output, hidden_num)
    flat, n_out = prepare_panet_params(params)  # one-time prep, out of the hot path

    out = jax.block_until_ready(panet_forward(x, flat, n_out))
    ref = panet_reference(x, params)
    assert out.shape == (batch, n_output)
    # bf16 MXU operands with f32 accumulation -> ~1e-2 relative error vs f32 ref.
    assert jnp.allclose(out, ref, atol=5e-2, rtol=5e-2), float(
        jnp.max(jnp.abs(out - ref))
    )

    # --- Larger config exercising the batch grid, batch padding and the
    #     per-generation tile selection / megacore-parallel path.
    n_feature2, n_hidden2, n_output2, hidden_num2 = 64, 256, 10, 2
    batch2 = 1000  # deliberately not a multiple of the batch tile
    x2 = jax.random.normal(k_x2, (batch2, n_feature2), jnp.float32)
    params2 = init_panet_params(k_p2, n_feature2, n_hidden2, n_output2, hidden_num2)
    flat2, n_out2 = prepare_panet_params(params2)

    out2 = jax.block_until_ready(panet_forward(x2, flat2, n_out2))
    ref2 = panet_reference(x2, params2)
    assert out2.shape == (batch2, n_output2)
    assert jnp.allclose(out2, ref2, atol=5e-2, rtol=5e-2), float(
        jnp.max(jnp.abs(out2 - ref2))
    )

    print("KERNEL_OK")
</pallas_src>

<mosaic_0001>
module attributes {stable_mosaic.version = 11 : i64} {
  func.func @kernel(%arg0: i32, %arg1: memref<16x16xf32, #tpu.memory_space<vmem>>, %arg2: memref<16x128xbf16, #tpu.memory_space<vmem>>, %arg3: memref<1x128xf32, #tpu.memory_space<vmem>>, %arg4: memref<128x128xbf16, #tpu.memory_space<vmem>>, %arg5: memref<1x128xf32, #tpu.memory_space<vmem>>, %arg6: memref<128x128xbf16, #tpu.memory_space<vmem>>, %arg7: memref<1x128xf32, #tpu.memory_space<vmem>>, %arg8: memref<16x128xf32, #tpu.memory_space<vmem>>) attributes {dimension_semantics = [#tpu.dimension_semantics<parallel>], iteration_bounds = array<i64: 1>, scalar_prefetch = 0 : i64, scratch_operands = 0 : i64, tpu.core_type = #tpu.core_type<tc>, window_params = [{transform_indices = @transform_0, window_bounds = array<i64: 16, 16>}, {pipeline_mode = #tpu.pipeline_mode<synchronous>, transform_indices = @transform_1, window_bounds = array<i64: 16, 128>}, {pipeline_mode = #tpu.pipeline_mode<synchronous>, transform_indices = @transform_2, window_bounds = array<i64: 1, 128>}, {pipeline_mode = #tpu.pipeline_mode<synchronous>, transform_indices = @transform_3, window_bounds = array<i64: 128, 128>}, {pipeline_mode = #tpu.pipeline_mode<synchronous>, transform_indices = @transform_4, window_bounds = array<i64: 1, 128>}, {pipeline_mode = #tpu.pipeline_mode<synchronous>, transform_indices = @transform_5, window_bounds = array<i64: 128, 128>}, {pipeline_mode = #tpu.pipeline_mode<synchronous>, transform_indices = @transform_6, window_bounds = array<i64: 1, 128>}, {transform_indices = @transform_7, window_bounds = array<i64: 16, 128>}]} {
    %c0 = arith.constant 0 : index
    %c0_0 = arith.constant 0 : index
    %0 = vector.load %arg1[%c0, %c0_0] : memref<16x16xf32, #tpu.memory_space<vmem>>, vector<16x16xf32>
    %1 = arith.truncf %0 : vector<16x16xf32> to vector<16x16xbf16>
    %c0_1 = arith.constant 0 : index
    %c0_2 = arith.constant 0 : index
    %2 = vector.load %arg2[%c0_1, %c0_2] : memref<16x128xbf16, #tpu.memory_space<vmem>>, vector<16x128xbf16>
    %cst = arith.constant dense<0.000000e+00> : vector<16x128xf32>
    %3 = tpu.matmul %1, %2, %cst {dimension_numbers = #tpu.dot_dimension_numbers<[1], [0], [0], [1], [0, 0, 1, 1], [], []>} : vector<16x16xbf16>, vector<16x128xbf16>, vector<16x128xf32> -> vector<16x128xf32>
    %c0_3 = arith.constant 0 : index
    %c0_4 = arith.constant 0 : index
    %4 = vector.load %arg3[%c0_3, %c0_4] : memref<1x128xf32, #tpu.memory_space<vmem>>, vector<1x128xf32>
    %5 = vector.broadcast %4 : vector<1x128xf32> to vector<16x128xf32>
    %6 = arith.addf %3, %5 : vector<16x128xf32>
    %cst_5 = arith.constant 0.000000e+00 : f32
    %7 = vector.broadcast %cst_5 : f32 to vector<16x128xf32>
    %8 = arith.maximumf %6, %7 : vector<16x128xf32>
    %9 = arith.truncf %8 : vector<16x128xf32> to vector<16x128xbf16>
    %c0_6 = arith.constant 0 : index
    %c0_7 = arith.constant 0 : index
    %10 = vector.load %arg4[%c0_6, %c0_7] : memref<128x128xbf16, #tpu.memory_space<vmem>>, vector<128x128xbf16>
    %cst_8 = arith.constant dense<0.000000e+00> : vector<16x128xf32>
    %11 = tpu.matmul %9, %10, %cst_8 {dimension_numbers = #tpu.dot_dimension_numbers<[1], [0], [0], [1], [0, 0, 1, 1], [], []>} : vector<16x128xbf16>, vector<128x128xbf16>, vector<16x128xf32> -> vector<16x128xf32>
    %c0_9 = arith.constant 0 : index
    %c0_10 = arith.constant 0 : index
    %12 = vector.load %arg5[%c0_9, %c0_10] : memref<1x128xf32, #tpu.memory_space<vmem>>, vector<1x128xf32>
    %13 = vector.broadcast %12 : vector<1x128xf32> to vector<16x128xf32>
    %14 = arith.addf %11, %13 : vector<16x128xf32>
    %cst_11 = arith.constant 0.000000e+00 : f32
    %15 = vector.broadcast %cst_11 : f32 to vector<16x128xf32>
    %16 = arith.maximumf %14, %15 : vector<16x128xf32>
    %17 = arith.truncf %16 : vector<16x128xf32> to vector<16x128xbf16>
    %c0_12 = arith.constant 0 : index
    %c0_13 = arith.constant 0 : index
    %18 = vector.load %arg6[%c0_12, %c0_13] : memref<128x128xbf16, #tpu.memory_space<vmem>>, vector<128x128xbf16>
    %cst_14 = arith.constant dense<0.000000e+00> : vector<16x128xf32>
    %19 = tpu.matmul %17, %18, %cst_14 {dimension_numbers = #tpu.dot_dimension_numbers<[1], [0], [0], [1], [0, 0, 1, 1], [], []>} : vector<16x128xbf16>, vector<128x128xbf16>, vector<16x128xf32> -> vector<16x128xf32>
    %c0_15 = arith.constant 0 : index
    %c0_16 = arith.constant 0 : index
    %20 = vector.load %arg7[%c0_15, %c0_16] : memref<1x128xf32, #tpu.memory_space<vmem>>, vector<1x128xf32>
    %21 = vector.broadcast %20 : vector<1x128xf32> to vector<16x128xf32>
    %22 = arith.addf %19, %21 : vector<16x128xf32>
    %c0_17 = arith.constant 0 : index
    %c0_18 = arith.constant 0 : index
    %23 = vector.load %arg8[%c0_17, %c0_18] : memref<16x128xf32, #tpu.memory_space<vmem>>, vector<16x128xf32>
    tpu.vector_store %arg8[%c0_17, %c0_18], %22 {strides = array<i32>} : memref<16x128xf32, #tpu.memory_space<vmem>>, vector<16x128xf32>,
    return
  }
  func.func @transform_0(%arg0: i32) -> (i32, i32) {
    %c0_i32 = arith.constant 0 : i32
    %c0_i32_0 = arith.constant 0 : i32
    return %arg0, %c0_i32 : i32, i32
  }
  func.func @transform_1(%arg0: i32) -> (i32, i32) {
    %c0_i32 = arith.constant 0 : i32
    %c0_i32_0 = arith.constant 0 : i32
    %c0_i32_1 = arith.constant 0 : i32
    return %c0_i32, %c0_i32_0 : i32, i32
  }
  func.func @transform_2(%arg0: i32) -> (i32, i32) {
    %c0_i32 = arith.constant 0 : i32
    %c0_i32_0 = arith.constant 0 : i32
    %c0_i32_1 = arith.constant 0 : i32
    return %c0_i32, %c0_i32_0 : i32, i32
  }
  func.func @transform_3(%arg0: i32) -> (i32, i32) {
    %c0_i32 = arith.constant 0 : i32
    %c0_i32_0 = arith.constant 0 : i32
    %c0_i32_1 = arith.constant 0 : i32
    return %c0_i32, %c0_i32_0 : i32, i32
  }
  func.func @transform_4(%arg0: i32) -> (i32, i32) {
    %c0_i32 = arith.constant 0 : i32
    %c0_i32_0 = arith.constant 0 : i32
    %c0_i32_1 = arith.constant 0 : i32
    return %c0_i32, %c0_i32_0 : i32, i32
  }
  func.func @transform_5(%arg0: i32) -> (i32, i32) {
    %c0_i32 = arith.constant 0 : i32
    %c0_i32_0 = arith.constant 0 : i32
    %c0_i32_1 = arith.constant 0 : i32
    return %c0_i32, %c0_i32_0 : i32, i32
  }
  func.func @transform_6(%arg0: i32) -> (i32, i32) {
    %c0_i32 = arith.constant 0 : i32
    %c0_i32_0 = arith.constant 0 : i32
    %c0_i32_1 = arith.constant 0 : i32
    return %c0_i32, %c0_i32_0 : i32, i32
  }
  func.func @transform_7(%arg0: i32) -> (i32, i32) {
    %c0_i32 = arith.constant 0 : i32
    %c0_i32_0 = arith.constant 0 : i32
    return %arg0, %c0_i32 : i32, i32
  }
}

module attributes {stable_mosaic.version = 11 : i64} {
  func.func @kernel(%arg0: i32, %arg1: memref<16x16xf32, #tpu.memory_space<vmem>>, %arg2: memref<16x128xbf16, #tpu.memory_space<vmem>>, %arg3: memref<1x128xf32, #tpu.memory_space<vmem>>, %arg4: memref<128x128xbf16, #tpu.memory_space<vmem>>, %arg5: memref<1x128xf32, #tpu.memory_space<vmem>>, %arg6: memref<128x128xbf16, #tpu.memory_space<vmem>>, %arg7: memref<1x128xf32, #tpu.memory_space<vmem>>, %arg8: memref<16x128xf32, #tpu.memory_space<vmem>>) attributes {dimension_semantics = [#tpu.dimension_semantics<parallel>], iteration_bounds = array<i64: 1>, scalar_prefetch = 0 : i64, scratch_operands = 0 : i64, tpu.core_type = #tpu.core_type<tc>, window_params = [{transform_indices = @transform_0, window_bounds = array<i64: 16, 16>}, {pipeline_mode = #tpu.pipeline_mode<synchronous>, transform_indices = @transform_1, window_bounds = array<i64: 16, 128>}, {pipeline_mode = #tpu.pipeline_mode<synchronous>, transform_indices = @transform_2, window_bounds = array<i64: 1, 128>}, {pipeline_mode = #tpu.pipeline_mode<synchronous>, transform_indices = @transform_3, window_bounds = array<i64: 128, 128>}, {pipeline_mode = #tpu.pipeline_mode<synchronous>, transform_indices = @transform_4, window_bounds = array<i64: 1, 128>}, {pipeline_mode = #tpu.pipeline_mode<synchronous>, transform_indices = @transform_5, window_bounds = array<i64: 128, 128>}, {pipeline_mode = #tpu.pipeline_mode<synchronous>, transform_indices = @transform_6, window_bounds = array<i64: 1, 128>}, {transform_indices = @transform_7, window_bounds = array<i64: 16, 128>}]} {
    %c0 = arith.constant 0 : index
    %c0_0 = arith.constant 0 : index
    %0 = vector.load %arg1[%c0, %c0_0] : memref<16x16xf32, #tpu.memory_space<vmem>>, vector<16x16xf32>
    %1 = arith.truncf %0 : vector<16x16xf32> to vector<16x16xbf16>
    %c0_1 = arith.constant 0 : index
    %c0_2 = arith.constant 0 : index
    %2 = vector.load %arg2[%c0_1, %c0_2] : memref<16x128xbf16, #tpu.memory_space<vmem>>, vector<16x128xbf16>
    %cst = arith.constant dense<0.000000e+00> : vector<16x128xf32>
    %3 = tpu.matmul %1, %2, %cst {dimension_numbers = #tpu.dot_dimension_numbers<[1], [0], [0], [1], [0, 0, 1, 1], [], []>} : vector<16x16xbf16>, vector<16x128xbf16>, vector<16x128xf32> -> vector<16x128xf32>
    %c0_3 = arith.constant 0 : index
    %c0_4 = arith.constant 0 : index
    %4 = vector.load %arg3[%c0_3, %c0_4] : memref<1x128xf32, #tpu.memory_space<vmem>>, vector<1x128xf32>
    %5 = vector.broadcast %4 : vector<1x128xf32> to vector<16x128xf32>
    %6 = arith.addf %3, %5 : vector<16x128xf32>
    %cst_5 = arith.constant 0.000000e+00 : f32
    %7 = vector.broadcast %cst_5 : f32 to vector<16x128xf32>
    %8 = arith.maximumf %6, %7 : vector<16x128xf32>
    %9 = arith.truncf %8 : vector<16x128xf32> to vector<16x128xbf16>
    %c0_6 = arith.constant 0 : index
    %c0_7 = arith.constant 0 : index
    %10 = vector.load %arg4[%c0_6, %c0_7] : memref<128x128xbf16, #tpu.memory_space<vmem>>, vector<128x128xbf16>
    %cst_8 = arith.constant dense<0.000000e+00> : vector<16x128xf32>
    %11 = tpu.matmul %9, %10, %cst_8 {dimension_numbers = #tpu.dot_dimension_numbers<[1], [0], [0], [1], [0, 0, 1, 1], [], []>} : vector<16x128xbf16>, vector<128x128xbf16>, vector<16x128xf32> -> vector<16x128xf32>
    %c0_9 = arith.constant 0 : index
    %c0_10 = arith.constant 0 : index
    %12 = vector.load %arg5[%c0_9, %c0_10] : memref<1x128xf32, #tpu.memory_space<vmem>>, vector<1x128xf32>
    %13 = vector.broadcast %12 : vector<1x128xf32> to vector<16x128xf32>
    %14 = arith.addf %11, %13 : vector<16x128xf32>
    %cst_11 = arith.constant 0.000000e+00 : f32
    %15 = vector.broadcast %cst_11 : f32 to vector<16x128xf32>
    %16 = arith.maximumf %14, %15 : vector<16x128xf32>
    %17 = arith.truncf %16 : vector<16x128xf32> to vector<16x128xbf16>
    %c0_12 = arith.constant 0 : index
    %c0_13 = arith.constant 0 : index
    %18 = vector.load %arg6[%c0_12, %c0_13] : memref<128x128xbf16, #tpu.memory_space<vmem>>, vector<128x128xbf16>
    %cst_14 = arith.constant dense<0.000000e+00> : vector<16x128xf32>
    %19 = tpu.matmul %17, %18, %cst_14 {dimension_numbers = #tpu.dot_dimension_numbers<[1], [0], [0], [1], [0, 0, 1, 1], [], []>} : vector<16x128xbf16>, vector<128x128xbf16>, vector<16x128xf32> -> vector<16x128xf32>
    %c0_15 = arith.constant 0 : index
    %c0_16 = arith.constant 0 : index
    %20 = vector.load %arg7[%c0_15, %c0_16] : memref<1x128xf32, #tpu.memory_space<vmem>>, vector<1x128xf32>
    %21 = vector.broadcast %20 : vector<1x128xf32> to vector<16x128xf32>
    %22 = arith.addf %19, %21 : vector<16x128xf32>
    %c0_17 = arith.constant 0 : index
    %c0_18 = arith.constant 0 : index
    %23 = vector.load %arg8[%c0_17, %c0_18] : memref<16x128xf32, #tpu.memory_space<vmem>>, vector<16x128xf32>
    tpu.vector_store %arg8[%c0_17, %c0_18], %22 {strides = array<i32>} : memref<16x128xf32, #tpu.memory_space<vmem>>, vector<16x128xf32>,
    return
  }
  func.func @transform_0(%arg0: i32) -> (i32, i32) {
    %c0_i32 = arith.constant 0 : i32
    %c0_i32_0 = arith.constant 0 : i32
    return %arg0, %c0_i32 : i32, i32
  }
  func.func @transform_1(%arg0: i32) -> (i32, i32) {
    %c0_i32 = arith.constant 0 : i32
    %c0_i32_0 = arith.constant 0 : i32
    %c0_i32_1 = arith.constant 0 : i32
    return %c0_i32, %c0_i32_0 : i32, i32
  }
  func.func @transform_2(%arg0: i32) -> (i32, i32) {
    %c0_i32 = arith.constant 0 : i32
    %c0_i32_0 = arith.constant 0 : i32
    %c0_i32_1 = arith.constant 0 : i32
    return %c0_i32, %c0_i32_0 : i32, i32
  }
  func.func @transform_3(%arg0: i32) -> (i32, i32) {
    %c0_i32 = arith.constant 0 : i32
    %c0_i32_0 = arith.constant 0 : i32
    %c0_i32_1 = arith.constant 0 : i32
    return %c0_i32, %c0_i32_0 : i32, i32
  }
  func.func @transform_4(%arg0: i32) -> (i32, i32) {
    %c0_i32 = arith.constant 0 : i32
    %c0_i32_0 = arith.constant 0 : i32
    %c0_i32_1 = arith.constant 0 : i32
    return %c0_i32, %c0_i32_0 : i32, i32
  }
  func.func @transform_5(%arg0: i32) -> (i32, i32) {
    %c0_i32 = arith.constant 0 : i32
    %c0_i32_0 = arith.constant 0 : i32
    %c0_i32_1 = arith.constant 0 : i32
    return %c0_i32, %c0_i32_0 : i32, i32
  }
  func.func @transform_6(%arg0: i32) -> (i32, i32) {
    %c0_i32 = arith.constant 0 : i32
    %c0_i32_0 = arith.constant 0 : i32
    %c0_i32_1 = arith.constant 0 : i32
    return %c0_i32, %c0_i32_0 : i32, i32
  }
  func.func @transform_7(%arg0: i32) -> (i32, i32) {
    %c0_i32 = arith.constant 0 : i32
    %c0_i32_0 = arith.constant 0 : i32
    return %arg0, %c0_i32 : i32, i32
  }
}

</mosaic_0001>

<llo_original>
// kernel: _panet_forward_impl.1
$region0: #{_panet_forward_impl.1}
  #allocation0 [shape = 'u32[]', space=smem, size = 0x4, offset = 0x4, fixed_abs, tag = 'smem constant byte address 0x4 - core index']
  #allocation1 [shape = 'u32[144,128]{1,0:T(1,128)}', space=vmem, size = 0x12000, scoped, tag = 'internal scratch']
  %s0 = inlined_call_operand.vmem [shape: f32[16,16], index: 0, kind: input, shape index: {}]
  %s1 = inlined_call_operand.vmem [shape: bf16[16,128], index: 1, kind: input, shape index: {}]
  %s2 = inlined_call_operand.vmem [shape: f32[1,128], index: 2, kind: input, shape index: {}]
  %s3 = inlined_call_operand.hbm [shape: bf16[128,128], index: 3, kind: input, shape index: {}]
  %s4 = inlined_call_operand.vmem [shape: f32[1,128], index: 4, kind: input, shape index: {}]
  %s5 = inlined_call_operand.hbm [shape: bf16[128,128], index: 5, kind: input, shape index: {}]
  %s6 = inlined_call_operand.vmem [shape: f32[1,128], index: 6, kind: input, shape index: {}]
  %s7 = inlined_call_operand.vmem [shape: f32[16,128], index: 7, kind: output, shape index: {}]
  %s8 = sld [smem:[#allocation0]]
  $region46: #{_panet_forward_impl.1} parent=0
    _
  %s10 = ssub.s32 1, %s8
  %s11 = scalar_select 0, %s10, %s8
  $region1: #{_panet_forward_impl.1} parent=0
    #allocation2 [shape = 'u8[32768]{0}', space=vmem, size = 0x8000, scoped, tag = 'input window, operand 3, single buffered']
    #allocation3 [shape = 's32[1]{0}', space=sflag, size = 0x4, scoped, tag = 'scoped memory for _panet_forward_impl.1']
    #allocation4 [shape = 'u8[32768]{0}', space=vmem, size = 0x8000, scoped, tag = 'input window, operand 5, single buffered']
    #allocation5 [shape = 's32[1]{0}', space=sflag, size = 0x4, scoped, tag = 'scoped memory for _panet_forward_impl.1']
    %12 = vsyncpa [#allocation3], 0
    %13 = vsyncpa [#allocation5], 0
    // Predicated region
    $region2: #{_panet_forward_impl.1} parent=1 // pred_check
      _
    $region3: #{_panet_forward_impl.1} parent=1 // pred_check_branch
      %15 = sbr.rel (0) target = $region5
    $region4: #{_panet_forward_impl.1} parent=1 // pred_region
      _
    $region5: #{_panet_forward_impl.1} parent=1 // pred_fallthru
      _
    // Predicated region
    $region6: #{_panet_forward_impl.1} parent=1 // pred_check
      _
    $region7: #{_panet_forward_impl.1} parent=1 // pred_check_branch
      %17 = sbr.rel (0) target = $region9
    $region8: #{_panet_forward_impl.1} parent=1 // pred_region
      _
    $region9: #{_panet_forward_impl.1} parent=1 // pred_fallthru
      _
    // Predicated region
    $region10: #{_panet_forward_impl.1} parent=1 // pred_check
      _
    $region11: #{_panet_forward_impl.1} parent=1 // pred_check_branch
      %19 = sbr.rel (0) target = $region13
    $region12: #{_panet_forward_impl.1} parent=1 // pred_region
      _
    $region13: #{_panet_forward_impl.1} parent=1 // pred_fallthru
      _
    // Predicated region
    $region14: #{_panet_forward_impl.1} parent=1 // pred_check
      _
    $region15: #{_panet_forward_impl.1} parent=1 // pred_check_branch
      %21 = sbr.rel (0) target = $region17
    $region16: #{_panet_forward_impl.1} parent=1 // pred_region
      %s23 = ssub.s32 1024, 1024
      %24 = vsyncadd [#allocation3], %s23
      %s25 = sshll.u32 [#allocation2], 4
      %s26 = int_to_ptr.vmem [resolvable:$true] %s25
      %31 = dma.hbm_to_vmem [thread:$0]  %s3, 1024, %s26, [#allocation3], 64, 64, 4
    $region17: #{_panet_forward_impl.1} parent=1 // pred_fallthru
      _
    // Predicated region
    $region18: #{_panet_forward_impl.1} parent=1 // pred_check
      _
    $region19: #{_panet_forward_impl.1} parent=1 // pred_check_branch
      %33 = sbr.rel (0) target = $region21
    $region20: #{_panet_forward_impl.1} parent=1 // pred_region
      _
    $region21: #{_panet_forward_impl.1} parent=1 // pred_fallthru
      _
    // Predicated region
    $region22: #{_panet_forward_impl.1} parent=1 // pred_check
      _
    $region23: #{_panet_forward_impl.1} parent=1 // pred_check_branch
      %35 = sbr.rel (0) target = $region25
    $region24: #{_panet_forward_impl.1} parent=1 // pred_region
      %s37 = ssub.s32 1024, 1024
      %38 = vsyncadd [#allocation5], %s37
      %s39 = sshll.u32 [#allocation4], 4
      %s40 = int_to_ptr.vmem [resolvable:$true] %s39
      %45 = dma.hbm_to_vmem [thread:$0]  %s5, 1024, %s40, [#allocation5], 64, 64, 4
    $region25: #{_panet_forward_impl.1} parent=1 // pred_fallthru
      _
    // Predicated region
    $region26: #{_panet_forward_impl.1} parent=1 // pred_check
      _
    $region27: #{_panet_forward_impl.1} parent=1 // pred_check_branch
      %47 = sbr.rel (0) target = $region29
    $region28: #{_panet_forward_impl.1} parent=1 // pred_region
      _
    $region29: #{_panet_forward_impl.1} parent=1 // pred_fallthru
      _
    // Predicated region
    $region30: #{_panet_forward_impl.1} parent=1 // pred_check
      _
    $region31: #{_panet_forward_impl.1} parent=1 // pred_check_branch
      %49 = sbr.rel (0) target = $region33
    $region32: #{_panet_forward_impl.1} parent=1 // pred_region
      %50 = dma.done [#allocation3], 1024
    $region33: #{_panet_forward_impl.1} parent=1 // pred_fallthru
      _
    // Predicated region
    $region34: #{_panet_forward_impl.1} parent=1 // pred_check
      _
    $region35: #{_panet_forward_impl.1} parent=1 // pred_check_branch
      %52 = sbr.rel (0) target = $region37
    $region36: #{_panet_forward_impl.1} parent=1 // pred_region
      %53 = dma.done [#allocation5], 1024
    $region37: #{_panet_forward_impl.1} parent=1 // pred_fallthru
      _
    %v55 = vld [vmem:[%s0] sm:$0xff]
    %v56 = vld [vmem:[%s0 + $0x8] sm:$0xff]
    %v57 = vpack.c.bf16 %v56, %v55
    %v58 = vld [vmem:[%s1] sm:$0xf]
    %v59 = vld [vmem:[%s1 + $0x4] sm:$0xf]
    %v60 = vld [vmem:[%s2] sm:$0x1]
    %v62 = vlaneseq
    %v63 = vshrl.u32 %v62, 7
    %v64 = vsub.s32 0, %v63
    %v65 = vrot.slane %v60, %v64
    %v69 = vunpack.c.l.b16 %v58
    %v70 = vunpack.c.l.b16 %v59
    %v71 = vpack.c.b16 %v70, %v69
    %vm73 = vcmask 130048
    %v75 = vsel %vm73, %v57, 0
    %77 = vmatprep.subr.bf16.mxu0 0
    %78 = vmatpush1.bf16.msra.mxu0 %v71
    %79 = vmatprep.subr.bf16.mxu0 0
    %80 = vmatpush1.bf16.msra.mxu0 0
    %81 = vmatprep.subr.bf16.mxu0 0
    %82 = vmatpush1.bf16.msra.mxu0 0
    %83 = vmatprep.subr.bf16.mxu0 0
    %84 = vmatpush1.bf16.msra.mxu0 0
    %85 = vmatprep.subr.bf16.mxu0 0
    %86 = vmatpush1.bf16.msra.mxu0 0
    %87 = vmatprep.subr.bf16.mxu0 0
    %88 = vmatpush1.bf16.msra.mxu0 0
    %89 = vmatprep.subr.bf16.mxu0 0
    %90 = vmatpush1.bf16.msra.mxu0 0
    %91 = vmatprep.subr.bf16.mxu0 0
    %92 = vmatpush1.bf16.msra.mxu0 0
    %93 = vmatprep.subr.bf16.mxu0 0
    %94 = vmatpush1.bf16.msra.mxu0 0
    %95 = vmatprep.subr.bf16.mxu0 0
    %96 = vmatpush1.bf16.msra.mxu0 0
    %97 = vmatprep.subr.bf16.mxu0 0
    %98 = vmatpush1.bf16.msra.mxu0 0
    %99 = vmatprep.subr.bf16.mxu0 0
    %100 = vmatpush1.bf16.msra.mxu0 0
    %101 = vmatprep.subr.bf16.mxu0 0
    %102 = vmatpush1.bf16.msra.mxu0 0
    %103 = vmatprep.subr.bf16.mxu0 0
    %104 = vmatpush1.bf16.msra.mxu0 0
    %105 = vmatprep.subr.bf16.mxu0 0
    %106 = vmatpush1.bf16.msra.mxu0 0
    %107 = vmatprep.subr.bf16.mxu0 0
    %108 = vmatpush1.bf16.msra.mxu0 0
    %109 = vmatprep.mubr.bf16.mxu0 0
    %110 = vmatmul.mubr.bf16.gmra.mrb[0].mxu0 %v75
    %v111 = vpop.f32.mrb[0].mxu0
    %v112 = vadd.f32 %v65, %v111
    %v113 = vpop.f32.mrb[0].mxu0
    %v114 = vpop.f32.mrb[0].mxu0
    %v115 = vadd.f32 %v65, %v114
    %v116 = vpop.f32.mrb[0].mxu0
    %117 = vdwg.mxu0
    %v118 = vmax.f32 %v112, 0.0
    %v119 = vmax.f32 %v115, 0.0
    %v120 = vpack.c.bf16 %v119, %v118
    %v121 = vld [vmem:[#allocation2] sm:$0xf]
    %v122 = vld [vmem:[#allocation2 + $0x4] sm:$0xf]
    %v123 = vld [vmem:[#allocation2 + $0x8] sm:$0xf]
    %v124 = vld [vmem:[#allocation2 + $0xc] sm:$0xf]
    %v125 = vld [vmem:[#allocation2 + $0x10] sm:$0xf]
    %v126 = vld [vmem:[#allocation2 + $0x14] sm:$0xf]
    %v127 = vld [vmem:[#allocation2 + $0x18] sm:$0xf]
    %v128 = vld [vmem:[#allocation2 + $0x1c] sm:$0xf]
    %v129 = vld [vmem:[#allocation2 + $0x20] sm:$0xf]
    %v130 = vld [vmem:[#allocation2 + $0x24] sm:$0xf]
    %v131 = vld [vmem:[#allocation2 + $0x28] sm:$0xf]
    %v132 = vld [vmem:[#allocation2 + $0x2c] sm:$0xf]
    %v133 = vld [vmem:[#allocation2 + $0x30] sm:$0xf]
    %v134 = vld [vmem:[#allocation2 + $0x34] sm:$0xf]
    %v135 = vld [vmem:[#allocation2 + $0x38] sm:$0xf]
    %v136 = vld [vmem:[#allocation2 + $0x3c] sm:$0xf]
    %v137 = vld [vmem:[%s4] sm:$0x1]
    %v139 = vlaneseq
    %v140 = vshrl.u32 %v139, 7
    %v141 = vsub.s32 0, %v140
    %v142 = vrot.slane %v137, %v141
    %v160 = vunpack.c.l.b16 %v121
    %v161 = vunpack.c.l.b16 %v122
    %v162 = vunpack.c.l.b16 %v123
    %v163 = vunpack.c.l.b16 %v124
    %v164 = vunpack.c.l.b16 %v125
    %v165 = vunpack.c.l.b16 %v126
    %v166 = vunpack.c.l.b16 %v127
    %v167 = vunpack.c.l.b16 %v128
    %v168 = vunpack.c.l.b16 %v129
    %v169 = vunpack.c.l.b16 %v130
    %v170 = vunpack.c.l.b16 %v131
    %v171 = vunpack.c.l.b16 %v132
    %v172 = vunpack.c.l.b16 %v133
    %v173 = vunpack.c.l.b16 %v134
    %v174 = vunpack.c.l.b16 %v135
    %v175 = vunpack.c.l.b16 %v136
    %v176 = vpack.c.b16 %v161, %v160
    %v177 = vpack.c.b16 %v163, %v162
    %v178 = vpack.c.b16 %v165, %v164
    %v179 = vpack.c.b16 %v167, %v166
    %v180 = vpack.c.b16 %v169, %v168
    %v181 = vpack.c.b16 %v171, %v170
    %v182 = vpack.c.b16 %v173, %v172
    %v183 = vpack.c.b16 %v175, %v174
    %192 = vmatprep.subr.bf16.mxu0 0
    %193 = vmatpush1.bf16.msra.mxu0 %v176
    %194 = vmatprep.subr.bf16.mxu0 0
    %195 = vmatpush1.bf16.msra.mxu0 %v177
    %196 = vmatprep.subr.bf16.mxu0 0
    %197 = vmatpush1.bf16.msra.mxu0 %v178
    %198 = vmatprep.subr.bf16.mxu0 0
    %199 = vmatpush1.bf16.msra.mxu0 %v179
    %200 = vmatprep.subr.bf16.mxu0 0
    %201 = vmatpush1.bf16.msra.mxu0 %v180
    %202 = vmatprep.subr.bf16.mxu0 0
    %203 = vmatpush1.bf16.msra.mxu0 %v181
    %204 = vmatprep.subr.bf16.mxu0 0
    %205 = vmatpush1.bf16.msra.mxu0 %v182
    %206 = vmatprep.subr.bf16.mxu0 0
    %207 = vmatpush1.bf16.msra.mxu0 %v183
    %208 = vmatprep.subr.bf16.mxu0 0
    %209 = vmatpush1.bf16.msra.mxu0 0
    %210 = vmatprep.subr.bf16.mxu0 0
    %211 = vmatpush1.bf16.msra.mxu0 0
    %212 = vmatprep.subr.bf16.mxu0 0
    %213 = vmatpush1.bf16.msra.mxu0 0
    %214 = vmatprep.subr.bf16.mxu0 0
    %215 = vmatpush1.bf16.msra.mxu0 0
    %216 = vmatprep.subr.bf16.mxu0 0
    %217 = vmatpush1.bf16.msra.mxu0 0
    %218 = vmatprep.subr.bf16.mxu0 0
    %219 = vmatpush1.bf16.msra.mxu0 0
    %220 = vmatprep.subr.bf16.mxu0 0
    %221 = vmatpush1.bf16.msra.mxu0 0
    %222 = vmatprep.subr.bf16.mxu0 0
    %223 = vmatpush1.bf16.msra.mxu0 0
    %224 = vmatprep.mubr.bf16.mxu0 0
    %225 = vmatmul.mubr.bf16.gmra.mrb[0].mxu0 %v120
    %v226 = vpop.f32.mrb[0].mxu0
    %v227 = vadd.f32 %v142, %v226
    %v228 = vpop.f32.mrb[0].mxu0
    %v229 = vpop.f32.mrb[0].mxu0
    %v230 = vadd.f32 %v142, %v229
    %v231 = vpop.f32.mrb[0].mxu0
    %232 = vdwg.mxu0
    %v233 = vmax.f32 %v227, 0.0
    %v234 = vmax.f32 %v230, 0.0
    %v235 = vpack.c.bf16 %v234, %v233
    %v236 = vld [vmem:[#allocation4] sm:$0xf]
    %v237 = vld [vmem:[#allocation4 + $0x4] sm:$0xf]
    %v238 = vld [vmem:[#allocation4 + $0x8] sm:$0xf]
    %v239 = vld [vmem:[#allocation4 + $0xc] sm:$0xf]
    %v240 = vld [vmem:[#allocation4 + $0x10] sm:$0xf]
    %v241 = vld [vmem:[#allocation4 + $0x14] sm:$0xf]
    %v242 = vld [vmem:[#allocation4 + $0x18] sm:$0xf]
    %v243 = vld [vmem:[#allocation4 + $0x1c] sm:$0xf]
    %v244 = vld [vmem:[#allocation4 + $0x20] sm:$0xf]
    %v245 = vld [vmem:[#allocation4 + $0x24] sm:$0xf]
    %v246 = vld [vmem:[#allocation4 + $0x28] sm:$0xf]
    %v247 = vld [vmem:[#allocation4 + $0x2c] sm:$0xf]
    %v248 = vld [vmem:[#allocation4 + $0x30] sm:$0xf]
    %v249 = vld [vmem:[#allocation4 + $0x34] sm:$0xf]
    %v250 = vld [vmem:[#allocation4 + $0x38] sm:$0xf]
    %v251 = vld [vmem:[#allocation4 + $0x3c] sm:$0xf]
    %v252 = vld [vmem:[%s6] sm:$0x1]
    %v254 = vlaneseq
    %v255 = vshrl.u32 %v254, 7
    %v256 = vsub.s32 0, %v255
    %v257 = vrot.slane %v252, %v256
    %v275 = vunpack.c.l.b16 %v236
    %v276 = vunpack.c.l.b16 %v237
    %v277 = vunpack.c.l.b16 %v238
    %v278 = vunpack.c.l.b16 %v239
    %v279 = vunpack.c.l.b16 %v240
    %v280 = vunpack.c.l.b16 %v241
    %v281 = vunpack.c.l.b16 %v242
    %v282 = vunpack.c.l.b16 %v243
    %v283 = vunpack.c.l.b16 %v244
    %v284 = vunpack.c.l.b16 %v245
    %v285 = vunpack.c.l.b16 %v246
    %v286 = vunpack.c.l.b16 %v247
    %v287 = vunpack.c.l.b16 %v248
    %v288 = vunpack.c.l.b16 %v249
    %v289 = vunpack.c.l.b16 %v250
    %v290 = vunpack.c.l.b16 %v251
    %v291 = vpack.c.b16 %v276, %v275
    %v292 = vpack.c.b16 %v278, %v277
    %v293 = vpack.c.b16 %v280, %v279
    %v294 = vpack.c.b16 %v282, %v281
    %v295 = vpack.c.b16 %v284, %v283
    %v296 = vpack.c.b16 %v286, %v285
    %v297 = vpack.c.b16 %v288, %v287
    %v298 = vpack.c.b16 %v290, %v289
    %307 = vmatprep.subr.bf16.mxu0 0
    %308 = vmatpush1.bf16.msra.mxu0 %v291
    %309 = vmatprep.subr.bf16.mxu0 0
    %310 = vmatpush1.bf16.msra.mxu0 %v292
    %311 = vmatprep.subr.bf16.mxu0 0
    %312 = vmatpush1.bf16.msra.mxu0 %v293
    %313 = vmatprep.subr.bf16.mxu0 0
    %314 = vmatpush1.bf16.msra.mxu0 %v294
    %315 = vmatprep.subr.bf16.mxu0 0
    %316 = vmatpush1.bf16.msra.mxu0 %v295
    %317 = vmatprep.subr.bf16.mxu0 0
    %318 = vmatpush1.bf16.msra.mxu0 %v296
    %319 = vmatprep.subr.bf16.mxu0 0
    %320 = vmatpush1.bf16.msra.mxu0 %v297
    %321 = vmatprep.subr.bf16.mxu0 0
    %322 = vmatpush1.bf16.msra.mxu0 %v298
    %323 = vmatprep.subr.bf16.mxu0 0
    %324 = vmatpush1.bf16.msra.mxu0 0
    %325 = vmatprep.subr.bf16.mxu0 0
    %326 = vmatpush1.bf16.msra.mxu0 0
    %327 = vmatprep.subr.bf16.mxu0 0
    %328 = vmatpush1.bf16.msra.mxu0 0
    %329 = vmatprep.subr.bf16.mxu0 0
    %330 = vmatpush1.bf16.msra.mxu0 0
    %331 = vmatprep.subr.bf16.mxu0 0
    %332 = vmatpush1.bf16.msra.mxu0 0
    %333 = vmatprep.subr.bf16.mxu0 0
    %334 = vmatpush1.bf16.msra.mxu0 0
    %335 = vmatprep.subr.bf16.mxu0 0
    %336 = vmatpush1.bf16.msra.mxu0 0
    %337 = vmatprep.subr.bf16.mxu0 0
    %338 = vmatpush1.bf16.msra.mxu0 0
    %339 = vmatprep.mubr.bf16.mxu0 0
    %340 = vmatmul.mubr.bf16.gmra.mrb[0].mxu0 %v235
    %v341 = vpop.f32.mrb[0].mxu0
    %v342 = vadd.f32 %v257, %v341
    %v343 = vpop.f32.mrb[0].mxu0
    %v344 = vpop.f32.mrb[0].mxu0
    %v345 = vadd.f32 %v257, %v344
    %v346 = vpop.f32.mrb[0].mxu0
    %347 = vdwg.mxu0
    %348 = vst [vmem:[%s7] sm:$0xff] %v342
    %349 = vst [vmem:[%s7 + $0x8] sm:$0xff] %v345
    // Predicated region
    $region38: #{_panet_forward_impl.1} parent=1 // pred_check
      _
    $region39: #{_panet_forward_impl.1} parent=1 // pred_check_branch
      %351 = sbr.rel (0) target = $region41
    $region40: #{_panet_forward_impl.1} parent=1 // pred_region
      _
    $region41: #{_panet_forward_impl.1} parent=1 // pred_fallthru
      _
    // Predicated region
    $region42: #{_panet_forward_impl.1} parent=1 // pred_check
      _
    $region43: #{_panet_forward_impl.1} parent=1 // pred_check_branch
      %353 = sbr.rel (0) target = $region45
    $region44: #{_panet_forward_impl.1} parent=1 // pred_region
      _
    $region45: #{_panet_forward_impl.1} parent=1 // pred_fallthru
      _
    %354 = vsyncpa [#allocation3], 1
    %355 = vsyncpa [#allocation5], 1

// kernel: _panet_forward_impl.1
$region0: #{_panet_forward_impl.1}
  #allocation0 [shape = 'u32[]', space=smem, size = 0x4, offset = 0x4, fixed_abs, tag = 'smem constant byte address 0x4 - core index']
  #allocation1 [shape = 'u32[144,128]{1,0:T(1,128)}', space=vmem, size = 0x12000, scoped, tag = 'internal scratch']
  %s0 = inlined_call_operand.vmem [shape: f32[16,16], index: 0, kind: input, shape index: {}]
  %s1 = inlined_call_operand.vmem [shape: bf16[16,128], index: 1, kind: input, shape index: {}]
  %s2 = inlined_call_operand.vmem [shape: f32[1,128], index: 2, kind: input, shape index: {}]
  %s3 = inlined_call_operand.hbm [shape: bf16[128,128], index: 3, kind: input, shape index: {}]
  %s4 = inlined_call_operand.vmem [shape: f32[1,128], index: 4, kind: input, shape index: {}]
  %s5 = inlined_call_operand.hbm [shape: bf16[128,128], index: 5, kind: input, shape index: {}]
  %s6 = inlined_call_operand.vmem [shape: f32[1,128], index: 6, kind: input, shape index: {}]
  %s7 = inlined_call_operand.vmem [shape: f32[16,128], index: 7, kind: output, shape index: {}]
  %s8 = sld [smem:[#allocation0]]
  $region46: #{_panet_forward_impl.1} parent=0
    _
  %s10 = ssub.s32 1, %s8
  %s11 = scalar_select 0, %s10, %s8
  $region1: #{_panet_forward_impl.1} parent=0
    #allocation2 [shape = 'u8[32768]{0}', space=vmem, size = 0x8000, scoped, tag = 'input window, operand 3, single buffered']
    #allocation3 [shape = 's32[1]{0}', space=sflag, size = 0x4, scoped, tag = 'scoped memory for _panet_forward_impl.1']
    #allocation4 [shape = 'u8[32768]{0}', space=vmem, size = 0x8000, scoped, tag = 'input window, operand 5, single buffered']
    #allocation5 [shape = 's32[1]{0}', space=sflag, size = 0x4, scoped, tag = 'scoped memory for _panet_forward_impl.1']
    %12 = vsyncpa [#allocation3], 0
    %13 = vsyncpa [#allocation5], 0
    // Predicated region
    $region2: #{_panet_forward_impl.1} parent=1 // pred_check
      _
    $region3: #{_panet_forward_impl.1} parent=1 // pred_check_branch
      %15 = sbr.rel (0) target = $region5
    $region4: #{_panet_forward_impl.1} parent=1 // pred_region
      _
    $region5: #{_panet_forward_impl.1} parent=1 // pred_fallthru
      _
    // Predicated region
    $region6: #{_panet_forward_impl.1} parent=1 // pred_check
      _
    $region7: #{_panet_forward_impl.1} parent=1 // pred_check_branch
      %17 = sbr.rel (0) target = $region9
    $region8: #{_panet_forward_impl.1} parent=1 // pred_region
      _
    $region9: #{_panet_forward_impl.1} parent=1 // pred_fallthru
      _
    // Predicated region
    $region10: #{_panet_forward_impl.1} parent=1 // pred_check
      _
    $region11: #{_panet_forward_impl.1} parent=1 // pred_check_branch
      %19 = sbr.rel (0) target = $region13
    $region12: #{_panet_forward_impl.1} parent=1 // pred_region
      _
    $region13: #{_panet_forward_impl.1} parent=1 // pred_fallthru
      _
    // Predicated region
    $region14: #{_panet_forward_impl.1} parent=1 // pred_check
      _
    $region15: #{_panet_forward_impl.1} parent=1 // pred_check_branch
      %21 = sbr.rel (0) target = $region17
    $region16: #{_panet_forward_impl.1} parent=1 // pred_region
      %s23 = ssub.s32 1024, 1024
      %24 = vsyncadd [#allocation3], %s23
      %s25 = sshll.u32 [#allocation2], 4
      %s26 = int_to_ptr.vmem [resolvable:$true] %s25
      %31 = dma.hbm_to_vmem [thread:$0]  %s3, 1024, %s26, [#allocation3], 64, 64, 4
    $region17: #{_panet_forward_impl.1} parent=1 // pred_fallthru
      _
    // Predicated region
    $region18: #{_panet_forward_impl.1} parent=1 // pred_check
      _
    $region19: #{_panet_forward_impl.1} parent=1 // pred_check_branch
      %33 = sbr.rel (0) target = $region21
    $region20: #{_panet_forward_impl.1} parent=1 // pred_region
      _
    $region21: #{_panet_forward_impl.1} parent=1 // pred_fallthru
      _
    // Predicated region
    $region22: #{_panet_forward_impl.1} parent=1 // pred_check
      _
    $region23: #{_panet_forward_impl.1} parent=1 // pred_check_branch
      %35 = sbr.rel (0) target = $region25
    $region24: #{_panet_forward_impl.1} parent=1 // pred_region
      %s37 = ssub.s32 1024, 1024
      %38 = vsyncadd [#allocation5], %s37
      %s39 = sshll.u32 [#allocation4], 4
      %s40 = int_to_ptr.vmem [resolvable:$true] %s39
      %45 = dma.hbm_to_vmem [thread:$0]  %s5, 1024, %s40, [#allocation5], 64, 64, 4
    $region25: #{_panet_forward_impl.1} parent=1 // pred_fallthru
      _
    // Predicated region
    $region26: #{_panet_forward_impl.1} parent=1 // pred_check
      _
    $region27: #{_panet_forward_impl.1} parent=1 // pred_check_branch
      %47 = sbr.rel (0) target = $region29
    $region28: #{_panet_forward_impl.1} parent=1 // pred_region
      _
    $region29: #{_panet_forward_impl.1} parent=1 // pred_fallthru
      _
    // Predicated region
    $region30: #{_panet_forward_impl.1} parent=1 // pred_check
      _
    $region31: #{_panet_forward_impl.1} parent=1 // pred_check_branch
      %49 = sbr.rel (0) target = $region33
    $region32: #{_panet_forward_impl.1} parent=1 // pred_region
      %50 = dma.done [#allocation3], 1024
    $region33: #{_panet_forward_impl.1} parent=1 // pred_fallthru
      _
    // Predicated region
    $region34: #{_panet_forward_impl.1} parent=1 // pred_check
      _
    $region35: #{_panet_forward_impl.1} parent=1 // pred_check_branch
      %52 = sbr.rel (0) target = $region37
    $region36: #{_panet_forward_impl.1} parent=1 // pred_region
      %53 = dma.done [#allocation5], 1024
    $region37: #{_panet_forward_impl.1} parent=1 // pred_fallthru
      _
    %v55 = vld [vmem:[%s0] sm:$0xff]
    %v56 = vld [vmem:[%s0 + $0x8] sm:$0xff]
    %v57 = vpack.c.bf16 %v56, %v55
    %v58 = vld [vmem:[%s1] sm:$0xf]
    %v59 = vld [vmem:[%s1 + $0x4] sm:$0xf]
    %v60 = vld [vmem:[%s2] sm:$0x1]
    %v62 = vlaneseq
    %v63 = vshrl.u32 %v62, 7
    %v64 = vsub.s32 0, %v63
    %v65 = vrot.slane %v60, %v64
    %v69 = vunpack.c.l.b16 %v58
    %v70 = vunpack.c.l.b16 %v59
    %v71 = vpack.c.b16 %v70, %v69
    %vm73 = vcmask 130048
    %v75 = vsel %vm73, %v57, 0
    %77 = vmatprep.subr.bf16.mxu0 0
    %78 = vmatpush1.bf16.msra.mxu0 %v71
    %79 = vmatprep.subr.bf16.mxu0 0
    %80 = vmatpush1.bf16.msra.mxu0 0
    %81 = vmatprep.subr.bf16.mxu0 0
    %82 = vmatpush1.bf16.msra.mxu0 0
    %83 = vmatprep.subr.bf16.mxu0 0
    %84 = vmatpush1.bf16.msra.mxu0 0
    %85 = vmatprep.subr.bf16.mxu0 0
    %86 = vmatpush1.bf16.msra.mxu0 0
    %87 = vmatprep.subr.bf16.mxu0 0
    %88 = vmatpush1.bf16.msra.mxu0 0
    %89 = vmatprep.subr.bf16.mxu0 0
    %90 = vmatpush1.bf16.msra.mxu0 0
    %91 = vmatprep.subr.bf16.mxu0 0
    %92 = vmatpush1.bf16.msra.mxu0 0
    %93 = vmatprep.subr.bf16.mxu0 0
    %94 = vmatpush1.bf16.msra.mxu0 0
    %95 = vmatprep.subr.bf16.mxu0 0
    %96 = vmatpush1.bf16.msra.mxu0 0
    %97 = vmatprep.subr.bf16.mxu0 0
    %98 = vmatpush1.bf16.msra.mxu0 0
    %99 = vmatprep.subr.bf16.mxu0 0
    %100 = vmatpush1.bf16.msra.mxu0 0
    %101 = vmatprep.subr.bf16.mxu0 0
    %102 = vmatpush1.bf16.msra.mxu0 0
    %103 = vmatprep.subr.bf16.mxu0 0
    %104 = vmatpush1.bf16.msra.mxu0 0
    %105 = vmatprep.subr.bf16.mxu0 0
    %106 = vmatpush1.bf16.msra.mxu0 0
    %107 = vmatprep.subr.bf16.mxu0 0
    %108 = vmatpush1.bf16.msra.mxu0 0
    %109 = vmatprep.mubr.bf16.mxu0 0
    %110 = vmatmul.mubr.bf16.gmra.mrb[0].mxu0 %v75
    %v111 = vpop.f32.mrb[0].mxu0
    %v112 = vadd.f32 %v65, %v111
    %v113 = vpop.f32.mrb[0].mxu0
    %v114 = vpop.f32.mrb[0].mxu0
    %v115 = vadd.f32 %v65, %v114
    %v116 = vpop.f32.mrb[0].mxu0
    %117 = vdwg.mxu0
    %v118 = vmax.f32 %v112, 0.0
    %v119 = vmax.f32 %v115, 0.0
    %v120 = vpack.c.bf16 %v119, %v118
    %v121 = vld [vmem:[#allocation2] sm:$0xf]
    %v122 = vld [vmem:[#allocation2 + $0x4] sm:$0xf]
    %v123 = vld [vmem:[#allocation2 + $0x8] sm:$0xf]
    %v124 = vld [vmem:[#allocation2 + $0xc] sm:$0xf]
    %v125 = vld [vmem:[#allocation2 + $0x10] sm:$0xf]
    %v126 = vld [vmem:[#allocation2 + $0x14] sm:$0xf]
    %v127 = vld [vmem:[#allocation2 + $0x18] sm:$0xf]
    %v128 = vld [vmem:[#allocation2 + $0x1c] sm:$0xf]
    %v129 = vld [vmem:[#allocation2 + $0x20] sm:$0xf]
    %v130 = vld [vmem:[#allocation2 + $0x24] sm:$0xf]
    %v131 = vld [vmem:[#allocation2 + $0x28] sm:$0xf]
    %v132 = vld [vmem:[#allocation2 + $0x2c] sm:$0xf]
    %v133 = vld [vmem:[#allocation2 + $0x30] sm:$0xf]
    %v134 = vld [vmem:[#allocation2 + $0x34] sm:$0xf]
    %v135 = vld [vmem:[#allocation2 + $0x38] sm:$0xf]
    %v136 = vld [vmem:[#allocation2 + $0x3c] sm:$0xf]
    %v137 = vld [vmem:[%s4] sm:$0x1]
    %v139 = vlaneseq
    %v140 = vshrl.u32 %v139, 7
    %v141 = vsub.s32 0, %v140
    %v142 = vrot.slane %v137, %v141
    %v160 = vunpack.c.l.b16 %v121
    %v161 = vunpack.c.l.b16 %v122
    %v162 = vunpack.c.l.b16 %v123
    %v163 = vunpack.c.l.b16 %v124
    %v164 = vunpack.c.l.b16 %v125
    %v165 = vunpack.c.l.b16 %v126
    %v166 = vunpack.c.l.b16 %v127
    %v167 = vunpack.c.l.b16 %v128
    %v168 = vunpack.c.l.b16 %v129
    %v169 = vunpack.c.l.b16 %v130
    %v170 = vunpack.c.l.b16 %v131
    %v171 = vunpack.c.l.b16 %v132
    %v172 = vunpack.c.l.b16 %v133
    %v173 = vunpack.c.l.b16 %v134
    %v174 = vunpack.c.l.b16 %v135
    %v175 = vunpack.c.l.b16 %v136
    %v176 = vpack.c.b16 %v161, %v160
    %v177 = vpack.c.b16 %v163, %v162
    %v178 = vpack.c.b16 %v165, %v164
    %v179 = vpack.c.b16 %v167, %v166
    %v180 = vpack.c.b16 %v169, %v168
    %v181 = vpack.c.b16 %v171, %v170
    %v182 = vpack.c.b16 %v173, %v172
    %v183 = vpack.c.b16 %v175, %v174
    %192 = vmatprep.subr.bf16.mxu0 0
    %193 = vmatpush1.bf16.msra.mxu0 %v176
    %194 = vmatprep.subr.bf16.mxu0 0
    %195 = vmatpush1.bf16.msra.mxu0 %v177
    %196 = vmatprep.subr.bf16.mxu0 0
    %197 = vmatpush1.bf16.msra.mxu0 %v178
    %198 = vmatprep.subr.bf16.mxu0 0
    %199 = vmatpush1.bf16.msra.mxu0 %v179
    %200 = vmatprep.subr.bf16.mxu0 0
    %201 = vmatpush1.bf16.msra.mxu0 %v180
    %202 = vmatprep.subr.bf16.mxu0 0
    %203 = vmatpush1.bf16.msra.mxu0 %v181
    %204 = vmatprep.subr.bf16.mxu0 0
    %205 = vmatpush1.bf16.msra.mxu0 %v182
    %206 = vmatprep.subr.bf16.mxu0 0
    %207 = vmatpush1.bf16.msra.mxu0 %v183
    %208 = vmatprep.subr.bf16.mxu0 0
    %209 = vmatpush1.bf16.msra.mxu0 0
    %210 = vmatprep.subr.bf16.mxu0 0
    %211 = vmatpush1.bf16.msra.mxu0 0
    %212 = vmatprep.subr.bf16.mxu0 0
    %213 = vmatpush1.bf16.msra.mxu0 0
    %214 = vmatprep.subr.bf16.mxu0 0
    %215 = vmatpush1.bf16.msra.mxu0 0
    %216 = vmatprep.subr.bf16.mxu0 0
    %217 = vmatpush1.bf16.msra.mxu0 0
    %218 = vmatprep.subr.bf16.mxu0 0
    %219 = vmatpush1.bf16.msra.mxu0 0
    %220 = vmatprep.subr.bf16.mxu0 0
    %221 = vmatpush1.bf16.msra.mxu0 0
    %222 = vmatprep.subr.bf16.mxu0 0
    %223 = vmatpush1.bf16.msra.mxu0 0
    %224 = vmatprep.mubr.bf16.mxu0 0
    %225 = vmatmul.mubr.bf16.gmra.mrb[0].mxu0 %v120
    %v226 = vpop.f32.mrb[0].mxu0
    %v227 = vadd.f32 %v142, %v226
    %v228 = vpop.f32.mrb[0].mxu0
    %v229 = vpop.f32.mrb[0].mxu0
    %v230 = vadd.f32 %v142, %v229
    %v231 = vpop.f32.mrb[0].mxu0
    %232 = vdwg.mxu0
    %v233 = vmax.f32 %v227, 0.0
    %v234 = vmax.f32 %v230, 0.0
    %v235 = vpack.c.bf16 %v234, %v233
    %v236 = vld [vmem:[#allocation4] sm:$0xf]
    %v237 = vld [vmem:[#allocation4 + $0x4] sm:$0xf]
    %v238 = vld [vmem:[#allocation4 + $0x8] sm:$0xf]
    %v239 = vld [vmem:[#allocation4 + $0xc] sm:$0xf]
    %v240 = vld [vmem:[#allocation4 + $0x10] sm:$0xf]
    %v241 = vld [vmem:[#allocation4 + $0x14] sm:$0xf]
    %v242 = vld [vmem:[#allocation4 + $0x18] sm:$0xf]
    %v243 = vld [vmem:[#allocation4 + $0x1c] sm:$0xf]
    %v244 = vld [vmem:[#allocation4 + $0x20] sm:$0xf]
    %v245 = vld [vmem:[#allocation4 + $0x24] sm:$0xf]
    %v246 = vld [vmem:[#allocation4 + $0x28] sm:$0xf]
    %v247 = vld [vmem:[#allocation4 + $0x2c] sm:$0xf]
    %v248 = vld [vmem:[#allocation4 + $0x30] sm:$0xf]
    %v249 = vld [vmem:[#allocation4 + $0x34] sm:$0xf]
    %v250 = vld [vmem:[#allocation4 + $0x38] sm:$0xf]
    %v251 = vld [vmem:[#allocation4 + $0x3c] sm:$0xf]
    %v252 = vld [vmem:[%s6] sm:$0x1]
    %v254 = vlaneseq
    %v255 = vshrl.u32 %v254, 7
    %v256 = vsub.s32 0, %v255
    %v257 = vrot.slane %v252, %v256
    %v275 = vunpack.c.l.b16 %v236
    %v276 = vunpack.c.l.b16 %v237
    %v277 = vunpack.c.l.b16 %v238
    %v278 = vunpack.c.l.b16 %v239
    %v279 = vunpack.c.l.b16 %v240
    %v280 = vunpack.c.l.b16 %v241
    %v281 = vunpack.c.l.b16 %v242
    %v282 = vunpack.c.l.b16 %v243
    %v283 = vunpack.c.l.b16 %v244
    %v284 = vunpack.c.l.b16 %v245
    %v285 = vunpack.c.l.b16 %v246
    %v286 = vunpack.c.l.b16 %v247
    %v287 = vunpack.c.l.b16 %v248
    %v288 = vunpack.c.l.b16 %v249
    %v289 = vunpack.c.l.b16 %v250
    %v290 = vunpack.c.l.b16 %v251
    %v291 = vpack.c.b16 %v276, %v275
    %v292 = vpack.c.b16 %v278, %v277
    %v293 = vpack.c.b16 %v280, %v279
    %v294 = vpack.c.b16 %v282, %v281
    %v295 = vpack.c.b16 %v284, %v283
    %v296 = vpack.c.b16 %v286, %v285
    %v297 = vpack.c.b16 %v288, %v287
    %v298 = vpack.c.b16 %v290, %v289
    %307 = vmatprep.subr.bf16.mxu0 0
    %308 = vmatpush1.bf16.msra.mxu0 %v291
    %309 = vmatprep.subr.bf16.mxu0 0
    %310 = vmatpush1.bf16.msra.mxu0 %v292
    %311 = vmatprep.subr.bf16.mxu0 0
    %312 = vmatpush1.bf16.msra.mxu0 %v293
    %313 = vmatprep.subr.bf16.mxu0 0
    %314 = vmatpush1.bf16.msra.mxu0 %v294
    %315 = vmatprep.subr.bf16.mxu0 0
    %316 = vmatpush1.bf16.msra.mxu0 %v295
    %317 = vmatprep.subr.bf16.mxu0 0
    %318 = vmatpush1.bf16.msra.mxu0 %v296
    %319 = vmatprep.subr.bf16.mxu0 0
    %320 = vmatpush1.bf16.msra.mxu0 %v297
    %321 = vmatprep.subr.bf16.mxu0 0
    %322 = vmatpush1.bf16.msra.mxu0 %v298
    %323 = vmatprep.subr.bf16.mxu0 0
    %324 = vmatpush1.bf16.msra.mxu0 0
    %325 = vmatprep.subr.bf16.mxu0 0
    %326 = vmatpush1.bf16.msra.mxu0 0
    %327 = vmatprep.subr.bf16.mxu0 0
    %328 = vmatpush1.bf16.msra.mxu0 0
    %329 = vmatprep.subr.bf16.mxu0 0
    %330 = vmatpush1.bf16.msra.mxu0 0
    %331 = vmatprep.subr.bf16.mxu0 0
    %332 = vmatpush1.bf16.msra.mxu0 0
    %333 = vmatprep.subr.bf16.mxu0 0
    %334 = vmatpush1.bf16.msra.mxu0 0
    %335 = vmatprep.subr.bf16.mxu0 0
    %336 = vmatpush1.bf16.msra.mxu0 0
    %337 = vmatprep.subr.bf16.mxu0 0
    %338 = vmatpush1.bf16.msra.mxu0 0
    %339 = vmatprep.mubr.bf16.mxu0 0
    %340 = vmatmul.mubr.bf16.gmra.mrb[0].mxu0 %v235
    %v341 = vpop.f32.mrb[0].mxu0
    %v342 = vadd.f32 %v257, %v341
    %v343 = vpop.f32.mrb[0].mxu0
    %v344 = vpop.f32.mrb[0].mxu0
    %v345 = vadd.f32 %v257, %v344
    %v346 = vpop.f32.mrb[0].mxu0
    %347 = vdwg.mxu0
    %348 = vst [vmem:[%s7] sm:$0xff] %v342
    %349 = vst [vmem:[%s7 + $0x8] sm:$0xff] %v345
    // Predicated region
    $region38: #{_panet_forward_impl.1} parent=1 // pred_check
      _
    $region39: #{_panet_forward_impl.1} parent=1 // pred_check_branch
      %351 = sbr.rel (0) target = $region41
    $region40: #{_panet_forward_impl.1} parent=1 // pred_region
      _
    $region41: #{_panet_forward_impl.1} parent=1 // pred_fallthru
      _
    // Predicated region
    $region42: #{_panet_forward_impl.1} parent=1 // pred_check
      _
    $region43: #{_panet_forward_impl.1} parent=1 // pred_check_branch
      %353 = sbr.rel (0) target = $region45
    $region44: #{_panet_forward_impl.1} parent=1 // pred_region
      _
    $region45: #{_panet_forward_impl.1} parent=1 // pred_fallthru
      _
    %354 = vsyncpa [#allocation3], 1
    %355 = vsyncpa [#allocation5], 1

</llo_original>
